<compile_context>
chip_gen: v6e
topology: v6e:2x2x1
jax: 0.10.0
libtpu: 0.0.40
codegen_flags: <defaults>
</compile_context>

<pallas_src>
import functools

import jax
import jax.numpy as jnp
import numpy as np
from jax.experimental import pallas as pl
from jax.experimental.pallas import tpu as pltpu

BN_EPS = 1e-5

# Targets; actual tiles are picked per problem size (multiples of 128).
TARGET_TM = 512
TARGET_TN = 512


# ----------------------------- Pallas kernels -----------------------------

def _conv_stats_kernel(p_ref, w_ref, o_ref, sum_ref, ssq_ref):
    """One (TM, Kp) x (Kp, TN) MXU matmul + fused per-channel sum / sumsq.

    grid = (Cout tiles, M tiles); the stat blocks (index (0, n)) stay resident
    across the M axis, so M must be "arbitrary"; the Cout axis is "parallel".
    """
    m_i = pl.program_id(1)

    acc = jnp.dot(p_ref[...], w_ref[...], preferred_element_type=jnp.float32)
    o_ref[...] = acc.astype(o_ref.dtype)          # single store per tile (bf16)

    @pl.when(m_i == 0)
    def _():
        sum_ref[...] = jnp.zeros_like(sum_ref)
        ssq_ref[...] = jnp.zeros_like(ssq_ref)

    sum_ref[...] += jnp.sum(acc, axis=0, keepdims=True)
    ssq_ref[...] += jnp.sum(acc * acc, axis=0, keepdims=True)


def _bn_relu_kernel(c_ref, scale_ref, shift_ref, o_ref):
    # y = relu(conv * scale + shift)   (scale/shift fold BN gamma/beta/stats)
    y = c_ref[...].astype(jnp.float32) * scale_ref[...] + shift_ref[...]
    o_ref[...] = jnp.maximum(y, 0.0).astype(o_ref.dtype)


def _bn_shortcut_relu_kernel(c_ref, scale_ref, shift_ref,
                             psc_ref, wsc_ref, bsc_ref, o_ref):
    # Fused: 1x1 shortcut conv (+ bias) + BN(scale/shift) + residual + ReLU.
    xs = jnp.dot(psc_ref[...], wsc_ref[...],
                 preferred_element_type=jnp.float32) + bsc_ref[...]
    y = c_ref[...].astype(jnp.float32) * scale_ref[...] + shift_ref[...] + xs
    o_ref[...] = jnp.maximum(y, 0.0).astype(o_ref.dtype)


# --------------------------- pallas_call wrappers ---------------------------

@functools.lru_cache(maxsize=None)
def _vmem_limit_bytes():
    # Generation-aware: ~half of physical VMEM (v7x has only 64 MiB), capped.
    try:
        cap = pltpu.get_tpu_info().vmem_capacity_bytes
        return int(min(64 * 1024 * 1024, cap // 2))
    except Exception:
        return 32 * 1024 * 1024


def _compiler_params(semantics):
    return pltpu.CompilerParams(dimension_semantics=semantics,
                                vmem_limit_bytes=_vmem_limit_bytes())


def _conv_with_stats(patches, weights, tm, tn):
    """patches (Mp,Kp) bf16 @ weights (Kp,Cp) bf16 -> (bf16 conv, f32 sum, f32 sumsq)."""
    mp, kp = patches.shape
    _, cp = weights.shape
    grid = (cp // tn, mp // tm)          # n outer, m inner
    return pl.pallas_call(
        _conv_stats_kernel,
        out_shape=(jax.ShapeDtypeStruct((mp, cp), jnp.bfloat16),
                   jax.ShapeDtypeStruct((1, cp), jnp.float32),
                   jax.ShapeDtypeStruct((1, cp), jnp.float32)),
        grid=grid,
        in_specs=[pl.BlockSpec((tm, kp), lambda n, m: (m, 0)),
                  # full-K weight column block: index only depends on n ->
                  # DMA'd once per Cout tile, VMEM-resident across the M loop.
                  pl.BlockSpec((kp, tn), lambda n, m: (0, n))],
        out_specs=(pl.BlockSpec((tm, tn), lambda n, m: (m, n)),
                   pl.BlockSpec((1, tn), lambda n, m: (0, n)),
                   pl.BlockSpec((1, tn), lambda n, m: (0, n))),
        compiler_params=_compiler_params(("parallel", "arbitrary")),
    )(patches, weights)


def _bn_relu(conv_out, scale, shift, out_dtype, tm, tn):
    mp, cp = conv_out.shape
    grid = (cp // tn, mp // tm)
    return pl.pallas_call(
        _bn_relu_kernel,
        out_shape=jax.ShapeDtypeStruct((mp, cp), out_dtype),
        grid=grid,
        in_specs=[pl.BlockSpec((tm, tn), lambda n, m: (m, n)),
                  pl.BlockSpec((1, tn), lambda n, m: (0, n)),
                  pl.BlockSpec((1, tn), lambda n, m: (0, n))],
        out_specs=pl.BlockSpec((tm, tn), lambda n, m: (m, n)),
        compiler_params=_compiler_params(("parallel", "parallel")),
    )(conv_out, scale, shift)


def _bn_shortcut_relu(conv_out, scale, shift, p_sc, w_sc, b_sc, tm, tn):
    mp, cp = conv_out.shape
    ksc = p_sc.shape[1]
    grid = (cp // tn, mp // tm)          # n outer -> wsc block resident per n
    return pl.pallas_call(
        _bn_shortcut_relu_kernel,
        out_shape=jax.ShapeDtypeStruct((mp, cp), jnp.float32),
        grid=grid,
        in_specs=[pl.BlockSpec((tm, tn), lambda n, m: (m, n)),
                  pl.BlockSpec((1, tn), lambda n, m: (0, n)),
                  pl.BlockSpec((1, tn), lambda n, m: (0, n)),
                  pl.BlockSpec((tm, ksc), lambda n, m: (m, 0)),
                  pl.BlockSpec((ksc, tn), lambda n, m: (0, n)),
                  pl.BlockSpec((1, tn), lambda n, m: (0, n))],
        out_specs=pl.BlockSpec((tm, tn), lambda n, m: (m, n)),
        compiler_params=_compiler_params(("parallel", "parallel")),
    )(conv_out, scale, shift, p_sc, w_sc, b_sc)


# ------------------------------- JAX glue ----------------------------------

def _round_up(v, m):
    return ((v + m - 1) // m) * m


def _pick_tiles(m, k_max, c):
    """Pick lane-dense tile sizes that fit comfortably in VMEM."""
    kp = _round_up(k_max, 128)
    cp = _round_up(c, 128)
    tn = min(TARGET_TN, cp)
    while cp % tn:
        tn -= 128
    tm = min(TARGET_TM, _round_up(m, 128))
    budget = max(8 * 1024 * 1024, _vmem_limit_bytes() // 2)
    # double-buffered bf16 patch + out tiles, resident bf16 weights, stats.
    while tm > 128 and (2 * tm * kp * 2 + kp * cp * 2 + 2 * tm * tn * 2) > budget:
        tm -= 128
    mp = _round_up(m, tm)
    return tm, tn, mp, cp


def _pad_to(x, rows, cols):
    r, c = rows - x.shape[0], cols - x.shape[1]
    if r or c:
        x = jnp.pad(x, ((0, r), (0, c)))
    return x


def _pad1d_to(v, length):
    p = length - v.shape[0]
    if p:
        v = jnp.pad(v, (0, p))
    return v


def _im2col(x_nhwc, kh, kw, stride, pad):
    """Extract conv patches -> ((M, kh*kw*C), (N, OH, OW))."""
    n, h, w, c = x_nhwc.shape
    oh = (h + 2 * pad - kh) // stride + 1
    ow = (w + 2 * pad - kw) // stride + 1
    xp = jnp.pad(x_nhwc, ((0, 0), (pad, pad), (pad, pad), (0, 0)))
    cols = []
    for i in range(kh):
        for j in range(kw):
            cols.append(xp[:, i:i + oh * stride:stride,
                           j:j + ow * stride:stride, :])
    patches = jnp.concatenate(cols, axis=-1)
    return patches.reshape(n * oh * ow, kh * kw * c), (n, oh, ow)


def _wmat(w_oihw):
    """(Cout, Cin, KH, KW) -> (KH*KW*Cin, Cout), matching im2col ordering."""
    cout, cin, kh, kw = w_oihw.shape
    return jnp.transpose(w_oihw, (2, 3, 1, 0)).reshape(kh * kw * cin, cout)


def _bn_scale_shift(chan_sum, chan_ssq, m_true, gamma, beta):
    # Single-pass E[x^2]-mean^2 (clamped); fine at the tested tolerance.
    mean = chan_sum / float(m_true)
    var = jnp.maximum(chan_ssq / float(m_true) - mean * mean, 0.0)
    inv_std = jax.lax.rsqrt(var + BN_EPS)          # EUP, not a VALU divide
    scale = gamma * inv_std
    shift = beta - mean * scale
    return scale, shift


def basic_block_forward(x_nchw, params, stride):
    x = jnp.transpose(x_nchw, (0, 2, 3, 1)).astype(jnp.float32)   # NHWC
    n, _, _, cin = x.shape
    cout = params["w0"].shape[0]

    # TODO(synk): do implicit im2col inside the kernel (9 accumulated matmuls
    # over halo'd NHWC tiles) instead of materializing the 9x patch matrix.
    p0, (_, oh, ow) = _im2col(x, 3, 3, stride, 1)
    p_sc, _ = _im2col(x, 1, 1, stride, 0)
    m_true = p0.shape[0]

    tm, tn, mp, cp = _pick_tiles(m_true, 9 * max(cin, cout), cout)
    k0p = _round_up(9 * cin, 128)
    k1p = _round_up(9 * cout, 128)
    kscp = _round_up(cin, 128)

    # Lane-dense padding + bf16 MXU operands.
    p0b = _pad_to(p0, mp, k0p).astype(jnp.bfloat16)
    pscb = _pad_to(p_sc, mp, kscp).astype(jnp.bfloat16)
    w0b = _pad_to(_wmat(params["w0"]), k0p, cp).astype(jnp.bfloat16)
    w1b = _pad_to(_wmat(params["w1"]), k1p, cp).astype(jnp.bfloat16)
    wscb = _pad_to(_wmat(params["w_sc"]), kscp, cp).astype(jnp.bfloat16)

    g0 = _pad1d_to(params["g0"], cp).reshape(1, cp)
    beta0 = _pad1d_to(params["beta0"], cp).reshape(1, cp)
    g1 = _pad1d_to(params["g1"], cp).reshape(1, cp)
    beta1 = _pad1d_to(params["beta1"], cp).reshape(1, cp)
    bsc = _pad1d_to(params["b_sc"], cp).reshape(1, cp)

    # cnv0 (bias dropped: cancels exactly under training-mode BN) + stats.
    c0, s0, q0 = _conv_with_stats(p0b, w0b, tm, tn)
    scale0, shift0 = _bn_scale_shift(s0, q0, m_true, g0, beta0)
    h0 = _bn_relu(c0, scale0, shift0, jnp.bfloat16, tm, tn)       # (Mp, Cp)

    # cnv1 patches built from the un-padded part of h0.
    h0_nhwc = h0[:m_true, :cout].reshape(n, oh, ow, cout)
    p1, _ = _im2col(h0_nhwc, 3, 3, 1, 1)
    p1b = _pad_to(p1, mp, k1p).astype(jnp.bfloat16)

    c1, s1, q1 = _conv_with_stats(p1b, w1b, tm, tn)
    scale1, shift1 = _bn_scale_shift(s1, q1, m_true, g1, beta1)

    # bn1 + fused 1x1 shortcut conv + residual add + relu (xs never hits HBM).
    y = _bn_shortcut_relu(c1, scale1, shift1, pscb, wscb, bsc, tm, tn)

    y = y[:m_true, :cout].reshape(n, oh, ow, cout)
    return jnp.transpose(y, (0, 3, 1, 2))                         # back to NCHW


# --------------------------- parameter creation -----------------------------

def init_params(key, in_chans, out_chans):
    ks = jax.random.split(key, 10)
    nrm = lambda k, s, scale=0.1: scale * jax.random.normal(k, s, jnp.float32)
    return dict(
        w_sc=nrm(ks[0], (out_chans, in_chans, 1, 1)),
        b_sc=nrm(ks[1], (out_chans,)),
        w0=nrm(ks[2], (out_chans, in_chans, 3, 3)),
        b0=nrm(ks[3], (out_chans,)),          # unused by the kernel path
        g0=1.0 + nrm(ks[4], (out_chans,)),
        beta0=nrm(ks[5], (out_chans,)),
        w1=nrm(ks[6], (out_chans, out_chans, 3, 3)),
        b1=nrm(ks[7], (out_chans,)),          # unused by the kernel path
        g1=1.0 + nrm(ks[8], (out_chans,)),
        beta1=nrm(ks[9], (out_chans,)),
    )


# ------------------------------ pure-JAX ref --------------------------------

def reference_forward(x, params, stride):
    def conv(x, w, b, stride, pad):
        y = jax.lax.conv_general_dilated(
            x, w, (stride, stride), [(pad, pad), (pad, pad)],
            dimension_numbers=("NCHW", "OIHW", "NCHW"),
            precision=jax.lax.Precision.HIGHEST)
        return y + b.reshape(1, -1, 1, 1)

    def bn(x, g, beta):
        mean = jnp.mean(x, axis=(0, 2, 3), keepdims=True)
        var = jnp.mean((x - mean) ** 2, axis=(0, 2, 3), keepdims=True)
        xn = (x - mean) / jnp.sqrt(var + BN_EPS)
        return xn * g.reshape(1, -1, 1, 1) + beta.reshape(1, -1, 1, 1)

    xs = conv(x, params["w_sc"], params["b_sc"], stride, 0)
    h = jax.nn.relu(bn(conv(x, params["w0"], params["b0"], stride, 1),
                       params["g0"], params["beta0"]))
    y = bn(conv(h, params["w1"], params["b1"], 1, 1),
           params["g1"], params["beta1"])
    return jax.nn.relu(y + xs)


# ---------------------------------- main ------------------------------------

if __name__ == "__main__":
    key = jax.random.PRNGKey(0)
    k_x, k_p = jax.random.split(key)

    N, IN_CH, OUT_CH, H, W, STRIDE = 2, 4, 8, 16, 16, 2
    x = jax.random.normal(k_x, (N, IN_CH, H, W), jnp.float32)
    params = init_params(k_p, IN_CH, OUT_CH)

    fwd = jax.jit(functools.partial(basic_block_forward, stride=STRIDE))
    out = jax.block_until_ready(fwd(x, params))

    ref = jax.block_until_ready(reference_forward(x, params, STRIDE))
    # bf16 MXU operands + bf16 conv intermediates (per perf guidance) vs the
    # f32 HIGHEST reference: allow a correspondingly looser tolerance.
    np.testing.assert_allclose(np.asarray(out), np.asarray(ref),
                               rtol=5e-2, atol=5e-2)
    assert out.shape == (N, OUT_CH, H // STRIDE, W // STRIDE)
    print("KERNEL_OK")
</pallas_src>

<mosaic_0001>
module attributes {stable_mosaic.version = 11 : i64} {
  func.func @_bn_relu_kernel(%arg0: i32, %arg1: i32, %arg2: memref<128x128xbf16, #tpu.memory_space<vmem>>, %arg3: memref<1x128xf32, #tpu.memory_space<vmem>>, %arg4: memref<1x128xf32, #tpu.memory_space<vmem>>, %arg5: memref<128x128xbf16, #tpu.memory_space<vmem>>) attributes {dimension_semantics = [#tpu.dimension_semantics<parallel>, #tpu.dimension_semantics<parallel>], iteration_bounds = array<i64: 1, 1>, scalar_prefetch = 0 : i64, scratch_operands = 0 : i64, tpu.core_type = #tpu.core_type<tc>, window_params = [{transform_indices = @transform_0, window_bounds = array<i64: 128, 128>}, {transform_indices = @transform_1, window_bounds = array<i64: 1, 128>}, {transform_indices = @transform_2, window_bounds = array<i64: 1, 128>}, {transform_indices = @transform_3, window_bounds = array<i64: 128, 128>}]} {
    %c0 = arith.constant 0 : index
    %c0_0 = arith.constant 0 : index
    %0 = vector.load %arg2[%c0, %c0_0] : memref<128x128xbf16, #tpu.memory_space<vmem>>, vector<128x128xbf16>
    %1 = arith.extf %0 : vector<128x128xbf16> to vector<128x128xf32>
    %c0_1 = arith.constant 0 : index
    %c0_2 = arith.constant 0 : index
    %2 = vector.load %arg3[%c0_1, %c0_2] : memref<1x128xf32, #tpu.memory_space<vmem>>, vector<1x128xf32>
    %3 = vector.broadcast %2 : vector<1x128xf32> to vector<128x128xf32>
    %4 = arith.mulf %1, %3 : vector<128x128xf32>
    %c0_3 = arith.constant 0 : index
    %c0_4 = arith.constant 0 : index
    %5 = vector.load %arg4[%c0_3, %c0_4] : memref<1x128xf32, #tpu.memory_space<vmem>>, vector<1x128xf32>
    %6 = vector.broadcast %5 : vector<1x128xf32> to vector<128x128xf32>
    %7 = arith.addf %4, %6 : vector<128x128xf32>
    %cst = arith.constant 0.000000e+00 : f32
    %8 = vector.broadcast %cst : f32 to vector<128x128xf32>
    %9 = arith.maximumf %7, %8 : vector<128x128xf32>
    %10 = arith.truncf %9 : vector<128x128xf32> to vector<128x128xbf16>
    %c0_5 = arith.constant 0 : index
    %c0_6 = arith.constant 0 : index
    %11 = vector.load %arg5[%c0_5, %c0_6] : memref<128x128xbf16, #tpu.memory_space<vmem>>, vector<128x128xbf16>
    tpu.vector_store %arg5[%c0_5, %c0_6], %10 {strides = array<i32>} : memref<128x128xbf16, #tpu.memory_space<vmem>>, vector<128x128xbf16>,
    return
  }
  func.func @transform_0(%arg0: i32, %arg1: i32) -> (i32, i32) {
    %c0_i32 = arith.constant 0 : i32
    return %arg1, %arg0 : i32, i32
  }
  func.func @transform_1(%arg0: i32, %arg1: i32) -> (i32, i32) {
    %c0_i32 = arith.constant 0 : i32
    %c0_i32_0 = arith.constant 0 : i32
    return %c0_i32, %arg0 : i32, i32
  }
  func.func @transform_2(%arg0: i32, %arg1: i32) -> (i32, i32) {
    %c0_i32 = arith.constant 0 : i32
    %c0_i32_0 = arith.constant 0 : i32
    return %c0_i32, %arg0 : i32, i32
  }
  func.func @transform_3(%arg0: i32, %arg1: i32) -> (i32, i32) {
    %c0_i32 = arith.constant 0 : i32
    return %arg1, %arg0 : i32, i32
  }
}

module attributes {stable_mosaic.version = 11 : i64} {
  func.func @_conv_stats_kernel(%arg0: i32, %arg1: i32, %arg2: memref<128x128xbf16, #tpu.memory_space<vmem>>, %arg3: memref<128x128xbf16, #tpu.memory_space<vmem>>, %arg4: memref<128x128xbf16, #tpu.memory_space<vmem>>, %arg5: memref<1x128xf32, #tpu.memory_space<vmem>>, %arg6: memref<1x128xf32, #tpu.memory_space<vmem>>) attributes {dimension_semantics = [#tpu.dimension_semantics<parallel>, #tpu.dimension_semantics<arbitrary>], iteration_bounds = array<i64: 1, 1>, scalar_prefetch = 0 : i64, scratch_operands = 0 : i64, tpu.core_type = #tpu.core_type<tc>, window_params = [{transform_indices = @transform_0, window_bounds = array<i64: 128, 128>}, {transform_indices = @transform_1, window_bounds = array<i64: 128, 128>}, {transform_indices = @transform_2, window_bounds = array<i64: 128, 128>}, {transform_indices = @transform_3, window_bounds = array<i64: 1, 128>}, {transform_indices = @transform_4, window_bounds = array<i64: 1, 128>}]} {
    %c0 = arith.constant 0 : index
    %c0_0 = arith.constant 0 : index
    %0 = vector.load %arg2[%c0, %c0_0] : memref<128x128xbf16, #tpu.memory_space<vmem>>, vector<128x128xbf16>
    %c0_1 = arith.constant 0 : index
    %c0_2 = arith.constant 0 : index
    %1 = vector.load %arg3[%c0_1, %c0_2] : memref<128x128xbf16, #tpu.memory_space<vmem>>, vector<128x128xbf16>
    %cst = arith.constant dense<0.000000e+00> : vector<128x128xf32>
    %2 = tpu.matmul %0, %1, %cst {dimension_numbers = #tpu.dot_dimension_numbers<[1], [0], [0], [1], [0, 0, 1, 1], [], []>} : vector<128x128xbf16>, vector<128x128xbf16>, vector<128x128xf32> -> vector<128x128xf32>
    %3 = arith.truncf %2 : vector<128x128xf32> to vector<128x128xbf16>
    %c0_3 = arith.constant 0 : index
    %c0_4 = arith.constant 0 : index
    %4 = vector.load %arg4[%c0_3, %c0_4] : memref<128x128xbf16, #tpu.memory_space<vmem>>, vector<128x128xbf16>
    tpu.vector_store %arg4[%c0_3, %c0_4], %3 {strides = array<i32>} : memref<128x128xbf16, #tpu.memory_space<vmem>>, vector<128x128xbf16>,
    %c0_i32 = arith.constant 0 : i32
    %5 = arith.cmpi eq, %arg1, %c0_i32 : i32
    %6 = arith.extui %5 : i1 to i32
    %c0_i32_5 = arith.constant 0 : i32
    %7 = arith.cmpi ne, %6, %c0_i32_5 : i32
    scf.if %7 {
      %cst_16 = arith.constant 0.000000e+00 : f32
      %19 = vector.broadcast %cst_16 : f32 to vector<1x128xf32>
      %c0_17 = arith.constant 0 : index
      %c0_18 = arith.constant 0 : index
      %20 = vector.load %arg5[%c0_17, %c0_18] : memref<1x128xf32, #tpu.memory_space<vmem>>, vector<1x128xf32>
      tpu.vector_store %arg5[%c0_17, %c0_18], %19 {strides = array<i32>} : memref<1x128xf32, #tpu.memory_space<vmem>>, vector<1x128xf32>,
      %cst_19 = arith.constant 0.000000e+00 : f32
      %21 = vector.broadcast %cst_19 : f32 to vector<1x128xf32>
      %c0_20 = arith.constant 0 : index
      %c0_21 = arith.constant 0 : index
      %22 = vector.load %arg6[%c0_20, %c0_21] : memref<1x128xf32, #tpu.memory_space<vmem>>, vector<1x128xf32>
      tpu.vector_store %arg6[%c0_20, %c0_21], %21 {strides = array<i32>} : memref<1x128xf32, #tpu.memory_space<vmem>>, vector<1x128xf32>,
    } else {
    }
    %c0_6 = arith.constant 0 : index
    %c0_7 = arith.constant 0 : index
    %8 = vector.load %arg5[%c0_6, %c0_7] : memref<1x128xf32, #tpu.memory_space<vmem>>, vector<1x128xf32>
    %cst_8 = arith.constant dense<0.000000e+00> : vector<128xf32>
    %9 = vector.multi_reduction <add>, %2, %cst_8 [0] : vector<128x128xf32> to vector<128xf32>
    %10 = vector.shape_cast %9 : vector<128xf32> to vector<1x128xf32>
    %11 = arith.addf %8, %10 : vector<1x128xf32>
    %c0_9 = arith.constant 0 : index
    %c0_10 = arith.constant 0 : index
    %12 = vector.load %arg5[%c0_9, %c0_10] : memref<1x128xf32, #tpu.memory_space<vmem>>, vector<1x128xf32>
    tpu.vector_store %arg5[%c0_9, %c0_10], %11 {strides = array<i32>} : memref<1x128xf32, #tpu.memory_space<vmem>>, vector<1x128xf32>,
    %c0_11 = arith.constant 0 : index
    %c0_12 = arith.constant 0 : index
    %13 = vector.load %arg6[%c0_11, %c0_12] : memref<1x128xf32, #tpu.memory_space<vmem>>, vector<1x128xf32>
    %14 = arith.mulf %2, %2 : vector<128x128xf32>
    %cst_13 = arith.constant dense<0.000000e+00> : vector<128xf32>
    %15 = vector.multi_reduction <add>, %14, %cst_13 [0] : vector<128x128xf32> to vector<128xf32>
    %16 = vector.shape_cast %15 : vector<128xf32> to vector<1x128xf32>
    %17 = arith.addf %13, %16 : vector<1x128xf32>
    %c0_14 = arith.constant 0 : index
    %c0_15 = arith.constant 0 : index
    %18 = vector.load %arg6[%c0_14, %c0_15] : memref<1x128xf32, #tpu.memory_space<vmem>>, vector<1x128xf32>
    tpu.vector_store %arg6[%c0_14, %c0_15], %17 {strides = array<i32>} : memref<1x128xf32, #tpu.memory_space<vmem>>, vector<1x128xf32>,
    return
  }
  func.func @transform_0(%arg0: i32, %arg1: i32) -> (i32, i32) {
    %c0_i32 = arith.constant 0 : i32
    %c0_i32_0 = arith.constant 0 : i32
    return %arg1, %c0_i32 : i32, i32
  }
  func.func @transform_1(%arg0: i32, %arg1: i32) -> (i32, i32) {
    %c0_i32 = arith.constant 0 : i32
    %c0_i32_0 = arith.constant 0 : i32
    return %c0_i32, %arg0 : i32, i32
  }
  func.func @transform_2(%arg0: i32, %arg1: i32) -> (i32, i32) {
    %c0_i32 = arith.constant 0 : i32
    return %arg1, %arg0 : i32, i32
  }
  func.func @transform_3(%arg0: i32, %arg1: i32) -> (i32, i32) {
    %c0_i32 = arith.constant 0 : i32
    %c0_i32_0 = arith.constant 0 : i32
    return %c0_i32, %arg0 : i32, i32
  }
  func.func @transform_4(%arg0: i32, %arg1: i32) -> (i32, i32) {
    %c0_i32 = arith.constant 0 : i32
    %c0_i32_0 = arith.constant 0 : i32
    return %c0_i32, %arg0 : i32, i32
  }
}

module attributes {stable_mosaic.version = 11 : i64} {
  func.func @_bn_shortcut_relu_kernel(%arg0: i32, %arg1: i32, %arg2: memref<128x128xbf16, #tpu.memory_space<vmem>>, %arg3: memref<1x128xf32, #tpu.memory_space<vmem>>, %arg4: memref<1x128xf32, #tpu.memory_space<vmem>>, %arg5: memref<128x128xbf16, #tpu.memory_space<vmem>>, %arg6: memref<128x128xbf16, #tpu.memory_space<vmem>>, %arg7: memref<1x128xf32, #tpu.memory_space<vmem>>, %arg8: memref<128x128xf32, #tpu.memory_space<vmem>>) attributes {dimension_semantics = [#tpu.dimension_semantics<parallel>, #tpu.dimension_semantics<parallel>], iteration_bounds = array<i64: 1, 1>, scalar_prefetch = 0 : i64, scratch_operands = 0 : i64, tpu.core_type = #tpu.core_type<tc>, window_params = [{transform_indices = @transform_0, window_bounds = array<i64: 128, 128>}, {transform_indices = @transform_1, window_bounds = array<i64: 1, 128>}, {transform_indices = @transform_2, window_bounds = array<i64: 1, 128>}, {transform_indices = @transform_3, window_bounds = array<i64: 128, 128>}, {transform_indices = @transform_4, window_bounds = array<i64: 128, 128>}, {transform_indices = @transform_5, window_bounds = array<i64: 1, 128>}, {transform_indices = @transform_6, window_bounds = array<i64: 128, 128>}]} {
    %c0 = arith.constant 0 : index
    %c0_0 = arith.constant 0 : index
    %0 = vector.load %arg5[%c0, %c0_0] : memref<128x128xbf16, #tpu.memory_space<vmem>>, vector<128x128xbf16>
    %c0_1 = arith.constant 0 : index
    %c0_2 = arith.constant 0 : index
    %1 = vector.load %arg6[%c0_1, %c0_2] : memref<128x128xbf16, #tpu.memory_space<vmem>>, vector<128x128xbf16>
    %cst = arith.constant dense<0.000000e+00> : vector<128x128xf32>
    %2 = tpu.matmul %0, %1, %cst {dimension_numbers = #tpu.dot_dimension_numbers<[1], [0], [0], [1], [0, 0, 1, 1], [], []>} : vector<128x128xbf16>, vector<128x128xbf16>, vector<128x128xf32> -> vector<128x128xf32>
    %c0_3 = arith.constant 0 : index
    %c0_4 = arith.constant 0 : index
    %3 = vector.load %arg7[%c0_3, %c0_4] : memref<1x128xf32, #tpu.memory_space<vmem>>, vector<1x128xf32>
    %4 = vector.broadcast %3 : vector<1x128xf32> to vector<128x128xf32>
    %5 = arith.addf %2, %4 : vector<128x128xf32>
    %c0_5 = arith.constant 0 : index
    %c0_6 = arith.constant 0 : index
    %6 = vector.load %arg2[%c0_5, %c0_6] : memref<128x128xbf16, #tpu.memory_space<vmem>>, vector<128x128xbf16>
    %7 = arith.extf %6 : vector<128x128xbf16> to vector<128x128xf32>
    %c0_7 = arith.constant 0 : index
    %c0_8 = arith.constant 0 : index
    %8 = vector.load %arg3[%c0_7, %c0_8] : memref<1x128xf32, #tpu.memory_space<vmem>>, vector<1x128xf32>
    %9 = vector.broadcast %8 : vector<1x128xf32> to vector<128x128xf32>
    %10 = arith.mulf %7, %9 : vector<128x128xf32>
    %c0_9 = arith.constant 0 : index
    %c0_10 = arith.constant 0 : index
    %11 = vector.load %arg4[%c0_9, %c0_10] : memref<1x128xf32, #tpu.memory_space<vmem>>, vector<1x128xf32>
    %12 = vector.broadcast %11 : vector<1x128xf32> to vector<128x128xf32>
    %13 = arith.addf %10, %12 : vector<128x128xf32>
    %14 = arith.addf %13, %5 : vector<128x128xf32>
    %cst_11 = arith.constant 0.000000e+00 : f32
    %15 = vector.broadcast %cst_11 : f32 to vector<128x128xf32>
    %16 = arith.maximumf %14, %15 : vector<128x128xf32>
    %c0_12 = arith.constant 0 : index
    %c0_13 = arith.constant 0 : index
    %17 = vector.load %arg8[%c0_12, %c0_13] : memref<128x128xf32, #tpu.memory_space<vmem>>, vector<128x128xf32>
    tpu.vector_store %arg8[%c0_12, %c0_13], %16 {strides = array<i32>} : memref<128x128xf32, #tpu.memory_space<vmem>>, vector<128x128xf32>,
    return
  }
  func.func @transform_0(%arg0: i32, %arg1: i32) -> (i32, i32) {
    %c0_i32 = arith.constant 0 : i32
    return %arg1, %arg0 : i32, i32
  }
  func.func @transform_1(%arg0: i32, %arg1: i32) -> (i32, i32) {
    %c0_i32 = arith.constant 0 : i32
    %c0_i32_0 = arith.constant 0 : i32
    return %c0_i32, %arg0 : i32, i32
  }
  func.func @transform_2(%arg0: i32, %arg1: i32) -> (i32, i32) {
    %c0_i32 = arith.constant 0 : i32
    %c0_i32_0 = arith.constant 0 : i32
    return %c0_i32, %arg0 : i32, i32
  }
  func.func @transform_3(%arg0: i32, %arg1: i32) -> (i32, i32) {
    %c0_i32 = arith.constant 0 : i32
    %c0_i32_0 = arith.constant 0 : i32
    return %arg1, %c0_i32 : i32, i32
  }
  func.func @transform_4(%arg0: i32, %arg1: i32) -> (i32, i32) {
    %c0_i32 = arith.constant 0 : i32
    %c0_i32_0 = arith.constant 0 : i32
    return %c0_i32, %arg0 : i32, i32
  }
  func.func @transform_5(%arg0: i32, %arg1: i32) -> (i32, i32) {
    %c0_i32 = arith.constant 0 : i32
    %c0_i32_0 = arith.constant 0 : i32
    return %c0_i32, %arg0 : i32, i32
  }
  func.func @transform_6(%arg0: i32, %arg1: i32) -> (i32, i32) {
    %c0_i32 = arith.constant 0 : i32
    return %arg1, %arg0 : i32, i32
  }
}

</mosaic_0001>

<llo_original>
// kernel: basic_block_forward.5
$region0: #{basic_block_forward.5}
  #allocation0 [shape = 'u32[]', space=smem, size = 0x4, offset = 0x4, fixed_abs, tag = 'smem constant byte address 0x4 - core index']
  #allocation1 [shape = 'u32[144,128]{1,0:T(1,128)}', space=vmem, size = 0x12000, scoped, tag = 'internal scratch']
  %s0 = inlined_call_operand.vmem [shape: bf16[128,128], index: 0, kind: input, shape index: {}]
  %s1 = inlined_call_operand.vmem [shape: f32[1,128], index: 1, kind: input, shape index: {}]
  %s2 = inlined_call_operand.vmem [shape: f32[1,128], index: 2, kind: input, shape index: {}]
  %s3 = inlined_call_operand.vmem [shape: bf16[128,128], index: 3, kind: output, shape index: {}]
  %s4 = sld [smem:[#allocation0]]
  $region22: #{basic_block_forward.5} parent=0
    _
  %s6 = ssub.s32 1, %s4
  %s7 = scalar_select 0, %s6, %s4
  // Predicated region
  $region2: #{basic_block_forward.5} parent=0 // pred_check
    _
  $region3: #{basic_block_forward.5} parent=0 // pred_check_branch
    %9 = sbr.rel (0) target = $region5
  $region4: #{basic_block_forward.5} parent=0 // pred_region
    _
  $region5: #{basic_block_forward.5} parent=0 // pred_fallthru
    _
  // Predicated region
  $region6: #{basic_block_forward.5} parent=0 // pred_check
    _
  $region7: #{basic_block_forward.5} parent=0 // pred_check_branch
    %11 = sbr.rel (0) target = $region9
  $region8: #{basic_block_forward.5} parent=0 // pred_region
    _
  $region9: #{basic_block_forward.5} parent=0 // pred_fallthru
    _
  // Predicated region
  $region10: #{basic_block_forward.5} parent=0 // pred_check
    _
  $region11: #{basic_block_forward.5} parent=0 // pred_check_branch
    %13 = sbr.rel (0) target = $region13
  $region12: #{basic_block_forward.5} parent=0 // pred_region
    _
  $region13: #{basic_block_forward.5} parent=0 // pred_fallthru
    _
  %v14 = vld [vmem:[%s0] sm:$0xf]
  %v15 = vld [vmem:[%s0 + $0x4] sm:$0xf]
  %v16 = vld [vmem:[%s0 + $0x8] sm:$0xf]
  %v17 = vld [vmem:[%s0 + $0xc] sm:$0xf]
  %v18 = vld [vmem:[%s0 + $0x10] sm:$0xf]
  %v19 = vld [vmem:[%s0 + $0x14] sm:$0xf]
  %v20 = vld [vmem:[%s0 + $0x18] sm:$0xf]
  %v21 = vld [vmem:[%s0 + $0x1c] sm:$0xf]
  %v22 = vld [vmem:[%s0 + $0x20] sm:$0xf]
  %v23 = vld [vmem:[%s0 + $0x24] sm:$0xf]
  %v24 = vld [vmem:[%s0 + $0x28] sm:$0xf]
  %v25 = vld [vmem:[%s0 + $0x2c] sm:$0xf]
  %v26 = vld [vmem:[%s0 + $0x30] sm:$0xf]
  %v27 = vld [vmem:[%s0 + $0x34] sm:$0xf]
  %v28 = vld [vmem:[%s0 + $0x38] sm:$0xf]
  %v29 = vld [vmem:[%s0 + $0x3c] sm:$0xf]
  %v30 = vunpack.c.l.bf16 %v14
  %v31 = vunpack.c.l.bf16 %v15
  %v32 = vunpack.c.l.bf16 %v16
  %v33 = vunpack.c.l.bf16 %v17
  %v34 = vunpack.c.l.bf16 %v18
  %v35 = vunpack.c.l.bf16 %v19
  %v36 = vunpack.c.l.bf16 %v20
  %v37 = vunpack.c.l.bf16 %v21
  %v38 = vunpack.c.l.bf16 %v22
  %v39 = vunpack.c.l.bf16 %v23
  %v40 = vunpack.c.l.bf16 %v24
  %v41 = vunpack.c.l.bf16 %v25
  %v42 = vunpack.c.l.bf16 %v26
  %v43 = vunpack.c.l.bf16 %v27
  %v44 = vunpack.c.l.bf16 %v28
  %v45 = vunpack.c.l.bf16 %v29
  %v46 = vld [vmem:[%s1] sm:$0x1]
  %v48 = vlaneseq
  %v49 = vshrl.u32 %v48, 7
  %v50 = vsub.s32 0, %v49
  %v51 = vrot.slane %v46, %v50
  %v53 = vmul.f32 %v30, %v51
  %v54 = vmul.f32 %v31, %v51
  %v55 = vmul.f32 %v32, %v51
  %v56 = vmul.f32 %v33, %v51
  %v57 = vmul.f32 %v34, %v51
  %v58 = vmul.f32 %v35, %v51
  %v59 = vmul.f32 %v36, %v51
  %v60 = vmul.f32 %v37, %v51
  %v61 = vmul.f32 %v38, %v51
  %v62 = vmul.f32 %v39, %v51
  %v63 = vmul.f32 %v40, %v51
  %v64 = vmul.f32 %v41, %v51
  %v65 = vmul.f32 %v42, %v51
  %v66 = vmul.f32 %v43, %v51
  %v67 = vmul.f32 %v44, %v51
  %v68 = vmul.f32 %v45, %v51
  %v69 = vld [vmem:[%s2] sm:$0x1]
  %v71 = vlaneseq
  %v72 = vshrl.u32 %v71, 7
  %v73 = vsub.s32 0, %v72
  %v74 = vrot.slane %v69, %v73
  %v76 = vadd.f32 %v53, %v74
  %v77 = vadd.f32 %v54, %v74
  %v78 = vadd.f32 %v55, %v74
  %v79 = vadd.f32 %v56, %v74
  %v80 = vadd.f32 %v57, %v74
  %v81 = vadd.f32 %v58, %v74
  %v82 = vadd.f32 %v59, %v74
  %v83 = vadd.f32 %v60, %v74
  %v84 = vadd.f32 %v61, %v74
  %v85 = vadd.f32 %v62, %v74
  %v86 = vadd.f32 %v63, %v74
  %v87 = vadd.f32 %v64, %v74
  %v88 = vadd.f32 %v65, %v74
  %v89 = vadd.f32 %v66, %v74
  %v90 = vadd.f32 %v67, %v74
  %v91 = vadd.f32 %v68, %v74
  %v92 = vmax.f32 %v76, 0.0
  %v93 = vmax.f32 %v77, 0.0
  %v94 = vmax.f32 %v78, 0.0
  %v95 = vmax.f32 %v79, 0.0
  %v96 = vmax.f32 %v80, 0.0
  %v97 = vmax.f32 %v81, 0.0
  %v98 = vmax.f32 %v82, 0.0
  %v99 = vmax.f32 %v83, 0.0
  %v100 = vmax.f32 %v84, 0.0
  %v101 = vmax.f32 %v85, 0.0
  %v102 = vmax.f32 %v86, 0.0
  %v103 = vmax.f32 %v87, 0.0
  %v104 = vmax.f32 %v88, 0.0
  %v105 = vmax.f32 %v89, 0.0
  %v106 = vmax.f32 %v90, 0.0
  %v107 = vmax.f32 %v91, 0.0
  %v108 = vpack.c.bf16 %v93, %v92
  %v109 = vpack.c.bf16 %v95, %v94
  %v110 = vpack.c.bf16 %v97, %v96
  %v111 = vpack.c.bf16 %v99, %v98
  %v112 = vpack.c.bf16 %v101, %v100
  %v113 = vpack.c.bf16 %v103, %v102
  %v114 = vpack.c.bf16 %v105, %v104
  %v115 = vpack.c.bf16 %v107, %v106
  %v124 = vunpack.c.l.b16 %v108
  %v125 = vunpack.c.h.b16 %v108
  %v126 = vunpack.c.l.b16 %v109
  %v127 = vunpack.c.h.b16 %v109
  %v128 = vunpack.c.l.b16 %v110
  %v129 = vunpack.c.h.b16 %v110
  %v130 = vunpack.c.l.b16 %v111
  %v131 = vunpack.c.h.b16 %v111
  %v132 = vunpack.c.l.b16 %v112
  %v133 = vunpack.c.h.b16 %v112
  %v134 = vunpack.c.l.b16 %v113
  %v135 = vunpack.c.h.b16 %v113
  %v136 = vunpack.c.l.b16 %v114
  %v137 = vunpack.c.h.b16 %v114
  %v138 = vunpack.c.l.b16 %v115
  %v139 = vunpack.c.h.b16 %v115
  %v140 = vpack.c.b16 %v124, %v124
  %v141 = vpack.c.b16 %v125, %v125
  %v142 = vpack.c.b16 %v126, %v126
  %v143 = vpack.c.b16 %v127, %v127
  %v144 = vpack.c.b16 %v128, %v128
  %v145 = vpack.c.b16 %v129, %v129
  %v146 = vpack.c.b16 %v130, %v130
  %v147 = vpack.c.b16 %v131, %v131
  %v148 = vpack.c.b16 %v132, %v132
  %v149 = vpack.c.b16 %v133, %v133
  %v150 = vpack.c.b16 %v134, %v134
  %v151 = vpack.c.b16 %v135, %v135
  %v152 = vpack.c.b16 %v136, %v136
  %v153 = vpack.c.b16 %v137, %v137
  %v154 = vpack.c.b16 %v138, %v138
  %v155 = vpack.c.b16 %v139, %v139
  %172 = vst [vmem:[%s3] sm:$0xf] %v140
  %173 = vst [vmem:[%s3 + $0x4] sm:$0xf] %v141
  %174 = vst [vmem:[%s3 + $0x8] sm:$0xf] %v142
  %175 = vst [vmem:[%s3 + $0xc] sm:$0xf] %v143
  %176 = vst [vmem:[%s3 + $0x10] sm:$0xf] %v144
  %177 = vst [vmem:[%s3 + $0x14] sm:$0xf] %v145
  %178 = vst [vmem:[%s3 + $0x18] sm:$0xf] %v146
  %179 = vst [vmem:[%s3 + $0x1c] sm:$0xf] %v147
  %180 = vst [vmem:[%s3 + $0x20] sm:$0xf] %v148
  %181 = vst [vmem:[%s3 + $0x24] sm:$0xf] %v149
  %182 = vst [vmem:[%s3 + $0x28] sm:$0xf] %v150
  %183 = vst [vmem:[%s3 + $0x2c] sm:$0xf] %v151
  %184 = vst [vmem:[%s3 + $0x30] sm:$0xf] %v152
  %185 = vst [vmem:[%s3 + $0x34] sm:$0xf] %v153
  %186 = vst [vmem:[%s3 + $0x38] sm:$0xf] %v154
  %187 = vst [vmem:[%s3 + $0x3c] sm:$0xf] %v155
  // Predicated region
  $region14: #{basic_block_forward.5} parent=0 // pred_check
    _
  $region15: #{basic_block_forward.5} parent=0 // pred_check_branch
    %189 = sbr.rel (0) target = $region17
  $region16: #{basic_block_forward.5} parent=0 // pred_region
    _
  $region17: #{basic_block_forward.5} parent=0 // pred_fallthru
    _
  // Predicated region
  $region18: #{basic_block_forward.5} parent=0 // pred_check
    _
  $region19: #{basic_block_forward.5} parent=0 // pred_check_branch
    %191 = sbr.rel (0) target = $region21
  $region20: #{basic_block_forward.5} parent=0 // pred_region
    _
  $region21: #{basic_block_forward.5} parent=0 // pred_fallthru
    _

// kernel: basic_block_forward.4
$region0: #{basic_block_forward.4}
  #allocation0 [shape = 'u32[]', space=smem, size = 0x4, offset = 0x4, fixed_abs, tag = 'smem constant byte address 0x4 - core index']
  #allocation1 [shape = 'u32[144,128]{1,0:T(1,128)}', space=vmem, size = 0x12000, scoped, tag = 'internal scratch']
  %s0 = inlined_call_operand.vmem [shape: bf16[128,128], index: 0, kind: input, shape index: {}]
  %s1 = inlined_call_operand.vmem [shape: bf16[128,128], index: 1, kind: input, shape index: {}]
  %s2 = inlined_call_operand.vmem [shape: bf16[128,128], index: 2, kind: output, shape index: {0}]
  %s3 = inlined_call_operand.vmem [shape: f32[1,128], index: 3, kind: output, shape index: {1}]
  %s4 = inlined_call_operand.vmem [shape: f32[1,128], index: 4, kind: output, shape index: {2}]
  %5 = xla_tuple %s2, %s3, %s4
  %s6 = sld [smem:[#allocation0]]
  $region38: #{basic_block_forward.4} parent=0
    _
  %s8 = ssub.s32 1, %s6
  %s9 = scalar_select 0, %s8, %s6
  // Predicated region
  $region2: #{basic_block_forward.4} parent=0 // pred_check
    _
  $region3: #{basic_block_forward.4} parent=0 // pred_check_branch
    %11 = sbr.rel (0) target = $region5
  $region4: #{basic_block_forward.4} parent=0 // pred_region
    _
  $region5: #{basic_block_forward.4} parent=0 // pred_fallthru
    _
  // Predicated region
  $region6: #{basic_block_forward.4} parent=0 // pred_check
    _
  $region7: #{basic_block_forward.4} parent=0 // pred_check_branch
    %13 = sbr.rel (0) target = $region9
  $region8: #{basic_block_forward.4} parent=0 // pred_region
    _
  $region9: #{basic_block_forward.4} parent=0 // pred_fallthru
    _
  %v15 = vld [vmem:[%s0] sm:$0xf]
  %v16 = vld [vmem:[%s0 + $0x4] sm:$0xf]
  %v17 = vld [vmem:[%s0 + $0x8] sm:$0xf]
  %v18 = vld [vmem:[%s0 + $0xc] sm:$0xf]
  %v19 = vld [vmem:[%s0 + $0x10] sm:$0xf]
  %v20 = vld [vmem:[%s0 + $0x14] sm:$0xf]
  %v21 = vld [vmem:[%s0 + $0x18] sm:$0xf]
  %v22 = vld [vmem:[%s0 + $0x1c] sm:$0xf]
  %v23 = vld [vmem:[%s0 + $0x20] sm:$0xf]
  %v24 = vld [vmem:[%s0 + $0x24] sm:$0xf]
  %v25 = vld [vmem:[%s0 + $0x28] sm:$0xf]
  %v26 = vld [vmem:[%s0 + $0x2c] sm:$0xf]
  %v27 = vld [vmem:[%s0 + $0x30] sm:$0xf]
  %v28 = vld [vmem:[%s0 + $0x34] sm:$0xf]
  %v29 = vld [vmem:[%s0 + $0x38] sm:$0xf]
  %v30 = vld [vmem:[%s0 + $0x3c] sm:$0xf]
  %v31 = vld [vmem:[%s1] sm:$0xf]
  %v32 = vld [vmem:[%s1 + $0x4] sm:$0xf]
  %v33 = vld [vmem:[%s1 + $0x8] sm:$0xf]
  %v34 = vld [vmem:[%s1 + $0xc] sm:$0xf]
  %v35 = vld [vmem:[%s1 + $0x10] sm:$0xf]
  %v36 = vld [vmem:[%s1 + $0x14] sm:$0xf]
  %v37 = vld [vmem:[%s1 + $0x18] sm:$0xf]
  %v38 = vld [vmem:[%s1 + $0x1c] sm:$0xf]
  %v39 = vld [vmem:[%s1 + $0x20] sm:$0xf]
  %v40 = vld [vmem:[%s1 + $0x24] sm:$0xf]
  %v41 = vld [vmem:[%s1 + $0x28] sm:$0xf]
  %v42 = vld [vmem:[%s1 + $0x2c] sm:$0xf]
  %v43 = vld [vmem:[%s1 + $0x30] sm:$0xf]
  %v44 = vld [vmem:[%s1 + $0x34] sm:$0xf]
  %v45 = vld [vmem:[%s1 + $0x38] sm:$0xf]
  %v46 = vld [vmem:[%s1 + $0x3c] sm:$0xf]
  %v63 = vunpack.c.l.b16 %v15
  %v64 = vunpack.c.l.b16 %v16
  %v65 = vunpack.c.l.b16 %v17
  %v66 = vunpack.c.l.b16 %v18
  %v67 = vunpack.c.l.b16 %v19
  %v68 = vunpack.c.l.b16 %v20
  %v69 = vunpack.c.l.b16 %v21
  %v70 = vunpack.c.l.b16 %v22
  %v71 = vunpack.c.l.b16 %v23
  %v72 = vunpack.c.l.b16 %v24
  %v73 = vunpack.c.l.b16 %v25
  %v74 = vunpack.c.l.b16 %v26
  %v75 = vunpack.c.l.b16 %v27
  %v76 = vunpack.c.l.b16 %v28
  %v77 = vunpack.c.l.b16 %v29
  %v78 = vunpack.c.l.b16 %v30
  %v79 = vpack.c.b16 %v64, %v63
  %v80 = vpack.c.b16 %v66, %v65
  %v81 = vpack.c.b16 %v68, %v67
  %v82 = vpack.c.b16 %v70, %v69
  %v83 = vpack.c.b16 %v72, %v71
  %v84 = vpack.c.b16 %v74, %v73
  %v85 = vpack.c.b16 %v76, %v75
  %v86 = vpack.c.b16 %v78, %v77
  %v111 = vunpack.c.l.b16 %v31
  %v112 = vunpack.c.l.b16 %v32
  %v113 = vunpack.c.l.b16 %v33
  %v114 = vunpack.c.l.b16 %v34
  %v115 = vunpack.c.l.b16 %v35
  %v116 = vunpack.c.l.b16 %v36
  %v117 = vunpack.c.l.b16 %v37
  %v118 = vunpack.c.l.b16 %v38
  %v119 = vunpack.c.l.b16 %v39
  %v120 = vunpack.c.l.b16 %v40
  %v121 = vunpack.c.l.b16 %v41
  %v122 = vunpack.c.l.b16 %v42
  %v123 = vunpack.c.l.b16 %v43
  %v124 = vunpack.c.l.b16 %v44
  %v125 = vunpack.c.l.b16 %v45
  %v126 = vunpack.c.l.b16 %v46
  %v127 = vpack.c.b16 %v112, %v111
  %v128 = vpack.c.b16 %v114, %v113
  %v129 = vpack.c.b16 %v116, %v115
  %v130 = vpack.c.b16 %v118, %v117
  %v131 = vpack.c.b16 %v120, %v119
  %v132 = vpack.c.b16 %v122, %v121
  %v133 = vpack.c.b16 %v124, %v123
  %v134 = vpack.c.b16 %v126, %v125
  %143 = vmatprep.subr.bf16.mxu0 0
  %144 = vmatpush1.bf16.msra.mxu0 %v134
  %145 = vmatprep.subr.bf16.mxu0 0
  %146 = vmatpush1.bf16.msra.mxu0 %v133
  %147 = vmatprep.subr.bf16.mxu0 0
  %148 = vmatpush1.bf16.msra.mxu0 %v132
  %149 = vmatprep.subr.bf16.mxu0 0
  %150 = vmatpush1.bf16.msra.mxu0 %v131
  %151 = vmatprep.subr.bf16.mxu0 0
  %152 = vmatpush1.bf16.msra.mxu0 %v130
  %153 = vmatprep.subr.bf16.mxu0 0
  %154 = vmatpush1.bf16.msra.mxu0 %v129
  %155 = vmatprep.subr.bf16.mxu0 0
  %156 = vmatpush1.bf16.msra.mxu0 %v128
  %157 = vmatprep.subr.bf16.mxu0 0
  %158 = vmatpush1.bf16.msra.mxu0 %v127
  %159 = vmatprep.subr.bf16.mxu0 0
  %160 = vmatpush2.bf16.msra.mxu0 0
  %161 = vmatprep.subr.bf16.mxu0 0
  %162 = vmatpush2.bf16.msra.mxu0 0
  %163 = vmatprep.subr.bf16.mxu0 0
  %164 = vmatpush2.bf16.msra.mxu0 0
  %165 = vmatprep.subr.bf16.mxu0 0
  %166 = vmatpush2.bf16.msra.mxu0 0
  %167 = vmatprep.subr.bf16.mxu0 0
  %168 = vmatpush2.bf16.msra.mxu0 0
  %169 = vmatprep.subr.bf16.mxu0 0
  %170 = vmatpush2.bf16.msra.mxu0 0
  %171 = vmatprep.subr.bf16.mxu0 0
  %172 = vmatpush2.bf16.msra.mxu0 0
  %173 = vmatprep.subr.bf16.mxu0 0
  %174 = vmatpush2.bf16.msra.mxu0 0
  %175 = vmatprep.mubr.bf16.mxu0 0
  %176 = vmatmul.mubr.bf16.gmra.mxu0 %v79
  %v177 = vpop.f32.mrf.mxu0
  %v178 = vadd.f32 0.0, %v177
  %v179 = vpop.f32.mrf.mxu0
  %v180 = vpop.f32.mrf.mxu0
  %v181 = vadd.f32 0.0, %v180
  %v182 = vpop.f32.mrf.mxu0
  %183 = vmatprep.mubr.bf16.mxu0 0
  %184 = vmatmul.mubr.bf16.gmra.mxu0 %v80
  %v185 = vpop.f32.mrf.mxu0
  %v186 = vadd.f32 0.0, %v185
  %v187 = vpop.f32.mrf.mxu0
  %v188 = vpop.f32.mrf.mxu0
  %v189 = vadd.f32 0.0, %v188
  %v190 = vpop.f32.mrf.mxu0
  %191 = vmatprep.mubr.bf16.mxu0 0
  %192 = vmatmul.mubr.bf16.gmra.mxu0 %v81
  %v193 = vpop.f32.mrf.mxu0
  %v194 = vadd.f32 0.0, %v193
  %v195 = vpop.f32.mrf.mxu0
  %v196 = vpop.f32.mrf.mxu0
  %v197 = vadd.f32 0.0, %v196
  %v198 = vpop.f32.mrf.mxu0
  %199 = vmatprep.mubr.bf16.mxu0 0
  %200 = vmatmul.mubr.bf16.gmra.mxu0 %v82
  %v201 = vpop.f32.mrf.mxu0
  %v202 = vadd.f32 0.0, %v201
  %v203 = vpop.f32.mrf.mxu0
  %v204 = vpop.f32.mrf.mxu0
  %v205 = vadd.f32 0.0, %v204
  %v206 = vpop.f32.mrf.mxu0
  %207 = vmatprep.mubr.bf16.mxu0 0
  %208 = vmatmul.mubr.bf16.gmra.mxu0 %v83
  %v209 = vpop.f32.mrf.mxu0
  %v210 = vadd.f32 0.0, %v209
  %v211 = vpop.f32.mrf.mxu0
  %v212 = vpop.f32.mrf.mxu0
  %v213 = vadd.f32 0.0, %v212
  %v214 = vpop.f32.mrf.mxu0
  %215 = vmatprep.mubr.bf16.mxu0 0
  %216 = vmatmul.mubr.bf16.gmra.mxu0 %v84
  %v217 = vpop.f32.mrf.mxu0
  %v218 = vadd.f32 0.0, %v217
  %v219 = vpop.f32.mrf.mxu0
  %v220 = vpop.f32.mrf.mxu0
  %v221 = vadd.f32 0.0, %v220
  %v222 = vpop.f32.mrf.mxu0
  %223 = vmatprep.mubr.bf16.mxu0 0
  %224 = vmatmul.mubr.bf16.gmra.mxu0 %v85
  %v225 = vpop.f32.mrf.mxu0
  %v226 = vadd.f32 0.0, %v225
  %v227 = vpop.f32.mrf.mxu0
  %v228 = vpop.f32.mrf.mxu0
  %v229 = vadd.f32 0.0, %v228
  %v230 = vpop.f32.mrf.mxu0
  %231 = vmatprep.mubr.bf16.mxu0 0
  %232 = vmatmul.mubr.bf16.gmra.mxu0 %v86
  %v233 = vpop.f32.mrf.mxu0
  %v234 = vadd.f32 0.0, %v233
  %v235 = vpop.f32.mrf.mxu0
  %v236 = vpop.f32.mrf.mxu0
  %v237 = vadd.f32 0.0, %v236
  %v238 = vpop.f32.mrf.mxu0
  %239 = vdwg.mxu0
  %v240 = vpack.c.bf16 %v181, %v178
  %v241 = vpack.c.bf16 %v189, %v186
  %v242 = vpack.c.bf16 %v197, %v194
  %v243 = vpack.c.bf16 %v205, %v202
  %v244 = vpack.c.bf16 %v213, %v210
  %v245 = vpack.c.bf16 %v221, %v218
  %v246 = vpack.c.bf16 %v229, %v226
  %v247 = vpack.c.bf16 %v237, %v234
  %v256 = vunpack.c.l.b16 %v240
  %v257 = vunpack.c.h.b16 %v240
  %v258 = vunpack.c.l.b16 %v241
  %v259 = vunpack.c.h.b16 %v241
  %v260 = vunpack.c.l.b16 %v242
  %v261 = vunpack.c.h.b16 %v242
  %v262 = vunpack.c.l.b16 %v243
  %v263 = vunpack.c.h.b16 %v243
  %v264 = vunpack.c.l.b16 %v244
  %v265 = vunpack.c.h.b16 %v244
  %v266 = vunpack.c.l.b16 %v245
  %v267 = vunpack.c.h.b16 %v245
  %v268 = vunpack.c.l.b16 %v246
  %v269 = vunpack.c.h.b16 %v246
  %v270 = vunpack.c.l.b16 %v247
  %v271 = vunpack.c.h.b16 %v247
  %v272 = vpack.c.b16 %v256, %v256
  %v273 = vpack.c.b16 %v257, %v257
  %v274 = vpack.c.b16 %v258, %v258
  %v275 = vpack.c.b16 %v259, %v259
  %v276 = vpack.c.b16 %v260, %v260
  %v277 = vpack.c.b16 %v261, %v261
  %v278 = vpack.c.b16 %v262, %v262
  %v279 = vpack.c.b16 %v263, %v263
  %v280 = vpack.c.b16 %v264, %v264
  %v281 = vpack.c.b16 %v265, %v265
  %v282 = vpack.c.b16 %v266, %v266
  %v283 = vpack.c.b16 %v267, %v267
  %v284 = vpack.c.b16 %v268, %v268
  %v285 = vpack.c.b16 %v269, %v269
  %v286 = vpack.c.b16 %v270, %v270
  %v287 = vpack.c.b16 %v271, %v271
  %304 = vst [vmem:[%s2] sm:$0xf] %v272
  %305 = vst [vmem:[%s2 + $0x4] sm:$0xf] %v273
  %306 = vst [vmem:[%s2 + $0x8] sm:$0xf] %v274
  %307 = vst [vmem:[%s2 + $0xc] sm:$0xf] %v275
  %308 = vst [vmem:[%s2 + $0x10] sm:$0xf] %v276
  %309 = vst [vmem:[%s2 + $0x14] sm:$0xf] %v277
  %310 = vst [vmem:[%s2 + $0x18] sm:$0xf] %v278
  %311 = vst [vmem:[%s2 + $0x1c] sm:$0xf] %v279
  %312 = vst [vmem:[%s2 + $0x20] sm:$0xf] %v280
  %313 = vst [vmem:[%s2 + $0x24] sm:$0xf] %v281
  %314 = vst [vmem:[%s2 + $0x28] sm:$0xf] %v282
  %315 = vst [vmem:[%s2 + $0x2c] sm:$0xf] %v283
  %316 = vst [vmem:[%s2 + $0x30] sm:$0xf] %v284
  %317 = vst [vmem:[%s2 + $0x34] sm:$0xf] %v285
  %318 = vst [vmem:[%s2 + $0x38] sm:$0xf] %v286
  %319 = vst [vmem:[%s2 + $0x3c] sm:$0xf] %v287
  %p320 = scmp.eq.s32.totalorder 0, 0
  // Predicated region
  $region10: #{basic_block_forward.4} parent=0 // pred_check
    %p321 = pneg %p320
  $region11: #{basic_block_forward.4} parent=0 // pred_check_branch
    %323 = sbr.rel (%p321) target = $region13
  $region12: #{basic_block_forward.4} parent=0 // pred_region
    %324 = vst [vmem:[%s3] sm:$0x1] 0.0
    %325 = vst [vmem:[%s4] sm:$0x1] 0.0
  $region13: #{basic_block_forward.4} parent=0 // pred_fallthru
    _
  %v326 = vld [vmem:[%s3] sm:$0x1]
  %v327 = vadd.f32 %v178, %v181
  %v328 = vadd.f32 %v327, %v186
  %v329 = vadd.f32 %v328, %v189
  %v330 = vadd.f32 %v329, %v194
  %v331 = vadd.f32 %v330, %v197
  %v332 = vadd.f32 %v331, %v202
  %v333 = vadd.f32 %v332, %v205
  %v334 = vadd.f32 %v333, %v210
  %v335 = vadd.f32 %v334, %v213
  %v336 = vadd.f32 %v335, %v218
  %v337 = vadd.f32 %v336, %v221
  %v338 = vadd.f32 %v337, %v226
  %v339 = vadd.f32 %v338, %v229
  %v340 = vadd.f32 %v339, %v234
  %v341 = vadd.f32 %v340, %v237
  %v342 = vrot.slane %v341, 4
  %v343 = vadd.f32 %v341, %v342
  %v344 = vrot.slane %v343, 2
  %v345 = vadd.f32 %v343, %v344
  %v346 = vrot.slane %v345, 1
  %v347 = vadd.f32 %v345, %v346
  %v348 = vadd.f32 %v326, %v347
  %349 = vst [vmem:[%s3] sm:$0x1] %v348
  %v350 = vld [vmem:[%s4] sm:$0x1]
  %v351 = vmul.f32 %v178, %v178
  %v352 = vmul.f32 %v181, %v181
  %v353 = vmul.f32 %v186, %v186
  %v354 = vmul.f32 %v189, %v189
  %v355 = vmul.f32 %v194, %v194
  %v356 = vmul.f32 %v197, %v197
  %v357 = vmul.f32 %v202, %v202
  %v358 = vmul.f32 %v205, %v205
  %v359 = vmul.f32 %v210, %v210
  %v360 = vmul.f32 %v213, %v213
  %v361 = vmul.f32 %v218, %v218
  %v362 = vmul.f32 %v221, %v221
  %v363 = vmul.f32 %v226, %v226
  %v364 = vmul.f32 %v229, %v229
  %v365 = vmul.f32 %v234, %v234
  %v366 = vmul.f32 %v237, %v237
  %v367 = vadd.f32 %v351, %v352
  %v368 = vadd.f32 %v367, %v353
  %v369 = vadd.f32 %v368, %v354
  %v370 = vadd.f32 %v369, %v355
  %v371 = vadd.f32 %v370, %v356
  %v372 = vadd.f32 %v371, %v357
  %v373 = vadd.f32 %v372, %v358
  %v374 = vadd.f32 %v373, %v359
  %v375 = vadd.f32 %v374, %v360
  %v376 = vadd.f32 %v375, %v361
  %v377 = vadd.f32 %v376, %v362
  %v378 = vadd.f32 %v377, %v363
  %v379 = vadd.f32 %v378, %v364
  %v380 = vadd.f32 %v379, %v365
  %v381 = vadd.f32 %v380, %v366
  %v382 = vrot.slane %v381, 4
  %v383 = vadd.f32 %v381, %v382
  %v384 = vrot.slane %v383, 2
  %v385 = vadd.f32 %v383, %v384
  %v386 = vrot.slane %v385, 1
  %v387 = vadd.f32 %v385, %v386
  %v388 = vadd.f32 %v350, %v387
  %389 = vst [vmem:[%s4] sm:$0x1] %v388
  // Predicated region
  $region14: #{basic_block_forward.4} parent=0 // pred_check
    _
  $region15: #{basic_block_forward.4} parent=0 // pred_check_branch
    %391 = sbr.rel (0) target = $region17
  $region16: #{basic_block_forward.4} parent=0 // pred_region
    _
  $region17: #{basic_block_forward.4} parent=0 // pred_fallthru
    _
  // Predicated region
  $region18: #{basic_block_forward.4} parent=0 // pred_check
    _
  $region19: #{basic_block_forward.4} parent=0 // pred_check_branch
    %393 = sbr.rel (0) target = $region21
  $region20: #{basic_block_forward.4} parent=0 // pred_region
    _
  $region21: #{basic_block_forward.4} parent=0 // pred_fallthru
    _
  // Predicated region
  $region22: #{basic_block_forward.4} parent=0 // pred_check
    _
  $region23: #{basic_block_forward.4} parent=0 // pred_check_branch
    %395 = sbr.rel (0) target = $region25
  $region24: #{basic_block_forward.4} parent=0 // pred_region
    _
  $region25: #{basic_block_forward.4} parent=0 // pred_fallthru
    _
  // Predicated region
  $region26: #{basic_block_forward.4} parent=0 // pred_check
    _
  $region27: #{basic_block_forward.4} parent=0 // pred_check_branch
    %397 = sbr.rel (0) target = $region29
  $region28: #{basic_block_forward.4} parent=0 // pred_region
    _
  $region29: #{basic_block_forward.4} parent=0 // pred_fallthru
    _
  // Predicated region
  $region30: #{basic_block_forward.4} parent=0 // pred_check
    _
  $region31: #{basic_block_forward.4} parent=0 // pred_check_branch
    %399 = sbr.rel (0) target = $region33
  $region32: #{basic_block_forward.4} parent=0 // pred_region
    _
  $region33: #{basic_block_forward.4} parent=0 // pred_fallthru
    _
  // Predicated region
  $region34: #{basic_block_forward.4} parent=0 // pred_check
    _
  $region35: #{basic_block_forward.4} parent=0 // pred_check_branch
    %401 = sbr.rel (0) target = $region37
  $region36: #{basic_block_forward.4} parent=0 // pred_region
    _
  $region37: #{basic_block_forward.4} parent=0 // pred_fallthru
    _

// kernel: basic_block_forward.7
$region0: #{basic_block_forward.7}
  #allocation0 [shape = 'u32[]', space=smem, size = 0x4, offset = 0x4, fixed_abs, tag = 'smem constant byte address 0x4 - core index']
  #allocation1 [shape = 'u32[144,128]{1,0:T(1,128)}', space=vmem, size = 0x12000, scoped, tag = 'internal scratch']
  %s0 = inlined_call_operand.vmem [shape: bf16[128,128], index: 0, kind: input, shape index: {}]
  %s1 = inlined_call_operand.vmem [shape: f32[1,128], index: 1, kind: input, shape index: {}]
  %s2 = inlined_call_operand.vmem [shape: f32[1,128], index: 2, kind: input, shape index: {}]
  %s3 = inlined_call_operand.vmem [shape: bf16[128,128], index: 3, kind: input, shape index: {}]
  %s4 = inlined_call_operand.vmem [shape: bf16[128,128], index: 4, kind: input, shape index: {}]
  %s5 = inlined_call_operand.vmem [shape: f32[1,128], index: 5, kind: input, shape index: {}]
  %s6 = inlined_call_operand.vmem [shape: f32[128,128], index: 6, kind: output, shape index: {}]
  %s7 = sld [smem:[#allocation0]]
  $region34: #{basic_block_forward.7} parent=0
    _
  %s9 = ssub.s32 1, %s7
  %s10 = scalar_select 0, %s9, %s7
  // Predicated region
  $region2: #{basic_block_forward.7} parent=0 // pred_check
    _
  $region3: #{basic_block_forward.7} parent=0 // pred_check_branch
    %12 = sbr.rel (0) target = $region5
  $region4: #{basic_block_forward.7} parent=0 // pred_region
    _
  $region5: #{basic_block_forward.7} parent=0 // pred_fallthru
    _
  // Predicated region
  $region6: #{basic_block_forward.7} parent=0 // pred_check
    _
  $region7: #{basic_block_forward.7} parent=0 // pred_check_branch
    %14 = sbr.rel (0) target = $region9
  $region8: #{basic_block_forward.7} parent=0 // pred_region
    _
  $region9: #{basic_block_forward.7} parent=0 // pred_fallthru
    _
  // Predicated region
  $region10: #{basic_block_forward.7} parent=0 // pred_check
    _
  $region11: #{basic_block_forward.7} parent=0 // pred_check_branch
    %16 = sbr.rel (0) target = $region13
  $region12: #{basic_block_forward.7} parent=0 // pred_region
    _
  $region13: #{basic_block_forward.7} parent=0 // pred_fallthru
    _
  // Predicated region
  $region14: #{basic_block_forward.7} parent=0 // pred_check
    _
  $region15: #{basic_block_forward.7} parent=0 // pred_check_branch
    %18 = sbr.rel (0) target = $region17
  $region16: #{basic_block_forward.7} parent=0 // pred_region
    _
  $region17: #{basic_block_forward.7} parent=0 // pred_fallthru
    _
  // Predicated region
  $region18: #{basic_block_forward.7} parent=0 // pred_check
    _
  $region19: #{basic_block_forward.7} parent=0 // pred_check_branch
    %20 = sbr.rel (0) target = $region21
  $region20: #{basic_block_forward.7} parent=0 // pred_region
    _
  $region21: #{basic_block_forward.7} parent=0 // pred_fallthru
    _
  // Predicated region
  $region22: #{basic_block_forward.7} parent=0 // pred_check
    _
  $region23: #{basic_block_forward.7} parent=0 // pred_check_branch
    %22 = sbr.rel (0) target = $region25
  $region24: #{basic_block_forward.7} parent=0 // pred_region
    _
  $region25: #{basic_block_forward.7} parent=0 // pred_fallthru
    _
  %v24 = vld [vmem:[%s3] sm:$0xf]
  %v25 = vld [vmem:[%s3 + $0x4] sm:$0xf]
  %v26 = vld [vmem:[%s3 + $0x8] sm:$0xf]
  %v27 = vld [vmem:[%s3 + $0xc] sm:$0xf]
  %v28 = vld [vmem:[%s3 + $0x10] sm:$0xf]
  %v29 = vld [vmem:[%s3 + $0x14] sm:$0xf]
  %v30 = vld [vmem:[%s3 + $0x18] sm:$0xf]
  %v31 = vld [vmem:[%s3 + $0x1c] sm:$0xf]
  %v32 = vld [vmem:[%s3 + $0x20] sm:$0xf]
  %v33 = vld [vmem:[%s3 + $0x24] sm:$0xf]
  %v34 = vld [vmem:[%s3 + $0x28] sm:$0xf]
  %v35 = vld [vmem:[%s3 + $0x2c] sm:$0xf]
  %v36 = vld [vmem:[%s3 + $0x30] sm:$0xf]
  %v37 = vld [vmem:[%s3 + $0x34] sm:$0xf]
  %v38 = vld [vmem:[%s3 + $0x38] sm:$0xf]
  %v39 = vld [vmem:[%s3 + $0x3c] sm:$0xf]
  %v40 = vld [vmem:[%s4] sm:$0xf]
  %v41 = vld [vmem:[%s4 + $0x4] sm:$0xf]
  %v42 = vld [vmem:[%s4 + $0x8] sm:$0xf]
  %v43 = vld [vmem:[%s4 + $0xc] sm:$0xf]
  %v44 = vld [vmem:[%s4 + $0x10] sm:$0xf]
  %v45 = vld [vmem:[%s4 + $0x14] sm:$0xf]
  %v46 = vld [vmem:[%s4 + $0x18] sm:$0xf]
  %v47 = vld [vmem:[%s4 + $0x1c] sm:$0xf]
  %v48 = vld [vmem:[%s4 + $0x20] sm:$0xf]
  %v49 = vld [vmem:[%s4 + $0x24] sm:$0xf]
  %v50 = vld [vmem:[%s4 + $0x28] sm:$0xf]
  %v51 = vld [vmem:[%s4 + $0x2c] sm:$0xf]
  %v52 = vld [vmem:[%s4 + $0x30] sm:$0xf]
  %v53 = vld [vmem:[%s4 + $0x34] sm:$0xf]
  %v54 = vld [vmem:[%s4 + $0x38] sm:$0xf]
  %v55 = vld [vmem:[%s4 + $0x3c] sm:$0xf]
  %v56 = vld [vmem:[%s5] sm:$0x1]
  %v58 = vlaneseq
  %v59 = vshrl.u32 %v58, 7
  %v60 = vsub.s32 0, %v59
  %v61 = vrot.slane %v56, %v60
  %v79 = vunpack.c.l.b16 %v24
  %v80 = vunpack.c.l.b16 %v25
  %v81 = vunpack.c.l.b16 %v26
  %v82 = vunpack.c.l.b16 %v27
  %v83 = vunpack.c.l.b16 %v28
  %v84 = vunpack.c.l.b16 %v29
  %v85 = vunpack.c.l.b16 %v30
  %v86 = vunpack.c.l.b16 %v31
  %v87 = vunpack.c.l.b16 %v32
  %v88 = vunpack.c.l.b16 %v33
  %v89 = vunpack.c.l.b16 %v34
  %v90 = vunpack.c.l.b16 %v35
  %v91 = vunpack.c.l.b16 %v36
  %v92 = vunpack.c.l.b16 %v37
  %v93 = vunpack.c.l.b16 %v38
  %v94 = vunpack.c.l.b16 %v39
  %v95 = vpack.c.b16 %v80, %v79
  %v96 = vpack.c.b16 %v82, %v81
  %v97 = vpack.c.b16 %v84, %v83
  %v98 = vpack.c.b16 %v86, %v85
  %v99 = vpack.c.b16 %v88, %v87
  %v100 = vpack.c.b16 %v90, %v89
  %v101 = vpack.c.b16 %v92, %v91
  %v102 = vpack.c.b16 %v94, %v93
  %v127 = vunpack.c.l.b16 %v40
  %v128 = vunpack.c.l.b16 %v41
  %v129 = vunpack.c.l.b16 %v42
  %v130 = vunpack.c.l.b16 %v43
  %v131 = vunpack.c.l.b16 %v44
  %v132 = vunpack.c.l.b16 %v45
  %v133 = vunpack.c.l.b16 %v46
  %v134 = vunpack.c.l.b16 %v47
  %v135 = vunpack.c.l.b16 %v48
  %v136 = vunpack.c.l.b16 %v49
  %v137 = vunpack.c.l.b16 %v50
  %v138 = vunpack.c.l.b16 %v51
  %v139 = vunpack.c.l.b16 %v52
  %v140 = vunpack.c.l.b16 %v53
  %v141 = vunpack.c.l.b16 %v54
  %v142 = vunpack.c.l.b16 %v55
  %v143 = vpack.c.b16 %v128, %v127
  %v144 = vpack.c.b16 %v130, %v129
  %v145 = vpack.c.b16 %v132, %v131
  %v146 = vpack.c.b16 %v134, %v133
  %v147 = vpack.c.b16 %v136, %v135
  %v148 = vpack.c.b16 %v138, %v137
  %v149 = vpack.c.b16 %v140, %v139
  %v150 = vpack.c.b16 %v142, %v141
  %159 = vmatprep.subr.bf16.mxu0 0
  %160 = vmatpush1.bf16.msra.mxu0 %v150
  %161 = vmatprep.subr.bf16.mxu0 0
  %162 = vmatpush1.bf16.msra.mxu0 %v149
  %163 = vmatprep.subr.bf16.mxu0 0
  %164 = vmatpush1.bf16.msra.mxu0 %v148
  %165 = vmatprep.subr.bf16.mxu0 0
  %166 = vmatpush1.bf16.msra.mxu0 %v147
  %167 = vmatprep.subr.bf16.mxu0 0
  %168 = vmatpush1.bf16.msra.mxu0 %v146
  %169 = vmatprep.subr.bf16.mxu0 0
  %170 = vmatpush1.bf16.msra.mxu0 %v145
  %171 = vmatprep.subr.bf16.mxu0 0
  %172 = vmatpush1.bf16.msra.mxu0 %v144
  %173 = vmatprep.subr.bf16.mxu0 0
  %174 = vmatpush1.bf16.msra.mxu0 %v143
  %175 = vmatprep.subr.bf16.mxu0 0
  %176 = vmatpush2.bf16.msra.mxu0 0
  %177 = vmatprep.subr.bf16.mxu0 0
  %178 = vmatpush2.bf16.msra.mxu0 0
  %179 = vmatprep.subr.bf16.mxu0 0
  %180 = vmatpush2.bf16.msra.mxu0 0
  %181 = vmatprep.subr.bf16.mxu0 0
  %182 = vmatpush2.bf16.msra.mxu0 0
  %183 = vmatprep.subr.bf16.mxu0 0
  %184 = vmatpush2.bf16.msra.mxu0 0
  %185 = vmatprep.subr.bf16.mxu0 0
  %186 = vmatpush2.bf16.msra.mxu0 0
  %187 = vmatprep.subr.bf16.mxu0 0
  %188 = vmatpush2.bf16.msra.mxu0 0
  %189 = vmatprep.subr.bf16.mxu0 0
  %190 = vmatpush2.bf16.msra.mxu0 0
  %191 = vmatprep.mubr.bf16.mxu0 0
  %192 = vmatmul.mubr.bf16.gmra.mxu0 %v95
  %v193 = vpop.f32.mrf.mxu0
  %v194 = vadd.f32 %v61, %v193
  %v195 = vpop.f32.mrf.mxu0
  %v196 = vpop.f32.mrf.mxu0
  %v197 = vadd.f32 %v61, %v196
  %v198 = vpop.f32.mrf.mxu0
  %199 = vmatprep.mubr.bf16.mxu0 0
  %200 = vmatmul.mubr.bf16.gmra.mxu0 %v96
  %v201 = vpop.f32.mrf.mxu0
  %v202 = vadd.f32 %v61, %v201
  %v203 = vpop.f32.mrf.mxu0
  %v204 = vpop.f32.mrf.mxu0
  %v205 = vadd.f32 %v61, %v204
  %v206 = vpop.f32.mrf.mxu0
  %207 = vmatprep.mubr.bf16.mxu0 0
  %208 = vmatmul.mubr.bf16.gmra.mxu0 %v97
  %v209 = vpop.f32.mrf.mxu0
  %v210 = vadd.f32 %v61, %v209
  %v211 = vpop.f32.mrf.mxu0
  %v212 = vpop.f32.mrf.mxu0
  %v213 = vadd.f32 %v61, %v212
  %v214 = vpop.f32.mrf.mxu0
  %215 = vmatprep.mubr.bf16.mxu0 0
  %216 = vmatmul.mubr.bf16.gmra.mxu0 %v98
  %v217 = vpop.f32.mrf.mxu0
  %v218 = vadd.f32 %v61, %v217
  %v219 = vpop.f32.mrf.mxu0
  %v220 = vpop.f32.mrf.mxu0
  %v221 = vadd.f32 %v61, %v220
  %v222 = vpop.f32.mrf.mxu0
  %223 = vmatprep.mubr.bf16.mxu0 0
  %224 = vmatmul.mubr.bf16.gmra.mxu0 %v99
  %v225 = vpop.f32.mrf.mxu0
  %v226 = vadd.f32 %v61, %v225
  %v227 = vpop.f32.mrf.mxu0
  %v228 = vpop.f32.mrf.mxu0
  %v229 = vadd.f32 %v61, %v228
  %v230 = vpop.f32.mrf.mxu0
  %231 = vmatprep.mubr.bf16.mxu0 0
  %232 = vmatmul.mubr.bf16.gmra.mxu0 %v100
  %v233 = vpop.f32.mrf.mxu0
  %v234 = vadd.f32 %v61, %v233
  %v235 = vpop.f32.mrf.mxu0
  %v236 = vpop.f32.mrf.mxu0
  %v237 = vadd.f32 %v61, %v236
  %v238 = vpop.f32.mrf.mxu0
  %239 = vmatprep.mubr.bf16.mxu0 0
  %240 = vmatmul.mubr.bf16.gmra.mxu0 %v101
  %v241 = vpop.f32.mrf.mxu0
  %v242 = vadd.f32 %v61, %v241
  %v243 = vpop.f32.mrf.mxu0
  %v244 = vpop.f32.mrf.mxu0
  %v245 = vadd.f32 %v61, %v244
  %v246 = vpop.f32.mrf.mxu0
  %247 = vmatprep.mubr.bf16.mxu0 0
  %248 = vmatmul.mubr.bf16.gmra.mxu0 %v102
  %v249 = vpop.f32.mrf.mxu0
  %v250 = vadd.f32 %v61, %v249
  %v251 = vpop.f32.mrf.mxu0
  %v252 = vpop.f32.mrf.mxu0
  %v253 = vadd.f32 %v61, %v252
  %v254 = vpop.f32.mrf.mxu0
  %255 = vdwg.mxu0
  %v256 = vld [vmem:[%s0] sm:$0xf]
  %v257 = vld [vmem:[%s0 + $0x4] sm:$0xf]
  %v258 = vld [vmem:[%s0 + $0x8] sm:$0xf]
  %v259 = vld [vmem:[%s0 + $0xc] sm:$0xf]
  %v260 = vld [vmem:[%s0 + $0x10] sm:$0xf]
  %v261 = vld [vmem:[%s0 + $0x14] sm:$0xf]
  %v262 = vld [vmem:[%s0 + $0x18] sm:$0xf]
  %v263 = vld [vmem:[%s0 + $0x1c] sm:$0xf]
  %v264 = vld [vmem:[%s0 + $0x20] sm:$0xf]
  %v265 = vld [vmem:[%s0 + $0x24] sm:$0xf]
  %v266 = vld [vmem:[%s0 + $0x28] sm:$0xf]
  %v267 = vld [vmem:[%s0 + $0x2c] sm:$0xf]
  %v268 = vld [vmem:[%s0 + $0x30] sm:$0xf]
  %v269 = vld [vmem:[%s0 + $0x34] sm:$0xf]
  %v270 = vld [vmem:[%s0 + $0x38] sm:$0xf]
  %v271 = vld [vmem:[%s0 + $0x3c] sm:$0xf]
  %v272 = vunpack.c.l.bf16 %v256
  %v273 = vunpack.c.l.bf16 %v257
  %v274 = vunpack.c.l.bf16 %v258
  %v275 = vunpack.c.l.bf16 %v259
  %v276 = vunpack.c.l.bf16 %v260
  %v277 = vunpack.c.l.bf16 %v261
  %v278 = vunpack.c.l.bf16 %v262
  %v279 = vunpack.c.l.bf16 %v263
  %v280 = vunpack.c.l.bf16 %v264
  %v281 = vunpack.c.l.bf16 %v265
  %v282 = vunpack.c.l.bf16 %v266
  %v283 = vunpack.c.l.bf16 %v267
  %v284 = vunpack.c.l.bf16 %v268
  %v285 = vunpack.c.l.bf16 %v269
  %v286 = vunpack.c.l.bf16 %v270
  %v287 = vunpack.c.l.bf16 %v271
  %v288 = vld [vmem:[%s1] sm:$0x1]
  %v290 = vlaneseq
  %v291 = vshrl.u32 %v290, 7
  %v292 = vsub.s32 0, %v291
  %v293 = vrot.slane %v288, %v292
  %v295 = vmul.f32 %v272, %v293
  %v296 = vmul.f32 %v273, %v293
  %v297 = vmul.f32 %v274, %v293
  %v298 = vmul.f32 %v275, %v293
  %v299 = vmul.f32 %v276, %v293
  %v300 = vmul.f32 %v277, %v293
  %v301 = vmul.f32 %v278, %v293
  %v302 = vmul.f32 %v279, %v293
  %v303 = vmul.f32 %v280, %v293
  %v304 = vmul.f32 %v281, %v293
  %v305 = vmul.f32 %v282, %v293
  %v306 = vmul.f32 %v283, %v293
  %v307 = vmul.f32 %v284, %v293
  %v308 = vmul.f32 %v285, %v293
  %v309 = vmul.f32 %v286, %v293
  %v310 = vmul.f32 %v287, %v293
  %v311 = vld [vmem:[%s2] sm:$0x1]
  %v313 = vlaneseq
  %v314 = vshrl.u32 %v313, 7
  %v315 = vsub.s32 0, %v314
  %v316 = vrot.slane %v311, %v315
  %v318 = vadd.f32 %v295, %v316
  %v319 = vadd.f32 %v296, %v316
  %v320 = vadd.f32 %v297, %v316
  %v321 = vadd.f32 %v298, %v316
  %v322 = vadd.f32 %v299, %v316
  %v323 = vadd.f32 %v300, %v316
  %v324 = vadd.f32 %v301, %v316
  %v325 = vadd.f32 %v302, %v316
  %v326 = vadd.f32 %v303, %v316
  %v327 = vadd.f32 %v304, %v316
  %v328 = vadd.f32 %v305, %v316
  %v329 = vadd.f32 %v306, %v316
  %v330 = vadd.f32 %v307, %v316
  %v331 = vadd.f32 %v308, %v316
  %v332 = vadd.f32 %v309, %v316
  %v333 = vadd.f32 %v310, %v316
  %v334 = vadd.f32 %v318, %v194
  %v335 = vadd.f32 %v319, %v197
  %v336 = vadd.f32 %v320, %v202
  %v337 = vadd.f32 %v321, %v205
  %v338 = vadd.f32 %v322, %v210
  %v339 = vadd.f32 %v323, %v213
  %v340 = vadd.f32 %v324, %v218
  %v341 = vadd.f32 %v325, %v221
  %v342 = vadd.f32 %v326, %v226
  %v343 = vadd.f32 %v327, %v229
  %v344 = vadd.f32 %v328, %v234
  %v345 = vadd.f32 %v329, %v237
  %v346 = vadd.f32 %v330, %v242
  %v347 = vadd.f32 %v331, %v245
  %v348 = vadd.f32 %v332, %v250
  %v349 = vadd.f32 %v333, %v253
  %v350 = vmax.f32 %v334, 0.0
  %v351 = vmax.f32 %v335, 0.0
  %v352 = vmax.f32 %v336, 0.0
  %v353 = vmax.f32 %v337, 0.0
  %v354 = vmax.f32 %v338, 0.0
  %v355 = vmax.f32 %v339, 0.0
  %v356 = vmax.f32 %v340, 0.0
  %v357 = vmax.f32 %v341, 0.0
  %v358 = vmax.f32 %v342, 0.0
  %v359 = vmax.f32 %v343, 0.0
  %v360 = vmax.f32 %v344, 0.0
  %v361 = vmax.f32 %v345, 0.0
  %v362 = vmax.f32 %v346, 0.0
  %v363 = vmax.f32 %v347, 0.0
  %v364 = vmax.f32 %v348, 0.0
  %v365 = vmax.f32 %v349, 0.0
  %366 = vst [vmem:[%s6] sm:$0xff] %v350
  %367 = vst [vmem:[%s6 + $0x8] sm:$0xff] %v351
  %368 = vst [vmem:[%s6 + $0x10] sm:$0xff] %v352
  %369 = vst [vmem:[%s6 + $0x18] sm:$0xff] %v353
  %370 = vst [vmem:[%s6 + $0x20] sm:$0xff] %v354
  %371 = vst [vmem:[%s6 + $0x28] sm:$0xff] %v355
  %372 = vst [vmem:[%s6 + $0x30] sm:$0xff] %v356
  %373 = vst [vmem:[%s6 + $0x38] sm:$0xff] %v357
  %374 = vst [vmem:[%s6 + $0x40] sm:$0xff] %v358
  %375 = vst [vmem:[%s6 + $0x48] sm:$0xff] %v359
  %376 = vst [vmem:[%s6 + $0x50] sm:$0xff] %v360
  %377 = vst [vmem:[%s6 + $0x58] sm:$0xff] %v361
  %378 = vst [vmem:[%s6 + $0x60] sm:$0xff] %v362
  %379 = vst [vmem:[%s6 + $0x68] sm:$0xff] %v363
  %380 = vst [vmem:[%s6 + $0x70] sm:$0xff] %v364
  %381 = vst [vmem:[%s6 + $0x78] sm:$0xff] %v365
  // Predicated region
  $region26: #{basic_block_forward.7} parent=0 // pred_check
    _
  $region27: #{basic_block_forward.7} parent=0 // pred_check_branch
    %383 = sbr.rel (0) target = $region29
  $region28: #{basic_block_forward.7} parent=0 // pred_region
    _
  $region29: #{basic_block_forward.7} parent=0 // pred_fallthru
    _
  // Predicated region
  $region30: #{basic_block_forward.7} parent=0 // pred_check
    _
  $region31: #{basic_block_forward.7} parent=0 // pred_check_branch
    %385 = sbr.rel (0) target = $region33
  $region32: #{basic_block_forward.7} parent=0 // pred_region
    _
  $region33: #{basic_block_forward.7} parent=0 // pred_fallthru
    _

</llo_original>
